<compile_context>
chip_gen: v6e
topology: v6e:2x2x1
jax: 0.10.0
libtpu: 0.0.40
codegen_flags: <defaults>
</compile_context>

<pallas_src>
import jax
import jax.numpy as jnp
from jax.experimental import pallas as pl
from jax.experimental.pallas import tpu as pltpu

_LANES = 128                      # lane width; keeps every store unmasked


def _pass1_reduce_kernel(x_ref, m_ref, s_ref):
    """Online global max + rescaled exp-sum over row tiles (flash-softmax)."""
    @pl.when(pl.program_id(0) == 0)
    def _():
        m_ref[...] = jnp.full_like(m_ref, -jnp.inf)
        s_ref[...] = jnp.zeros_like(s_ref)

    x = x_ref[...]                                       # (tr, 128) f32
    # VPU-first partial reduction along rows, single cross-lane XLU finish.
    col_max = jnp.max(x, axis=0, keepdims=True)          # (1, 128)  VPU
    tile_max = jnp.max(col_max, axis=1, keepdims=True)   # (1, 1)    XLU

    m_old = m_ref[...]
    m_new = jnp.maximum(m_old, tile_max)

    e = jnp.exp(x - m_new)                               # EUP
    col_sum = jnp.sum(e, axis=0, keepdims=True)          # (1, 128)  VPU
    tile_sum = jnp.sum(col_sum, axis=1, keepdims=True)   # (1, 1)    XLU

    # Rescale running sum to the new max (exp(-inf - m) == 0 covers init).
    s_ref[...] = s_ref[...] * jnp.exp(m_old - m_new) + tile_sum
    m_ref[...] = m_new


def _pass2_normalize_kernel(m_ref, s_ref, x_ref, o_ref):
    """out = exp(x - m) * (1 / s); pure load -> sub -> exp -> mul -> store."""
    m = m_ref[...]                                       # (1, 1)
    s = s_ref[...]                                       # (1, 1)
    # EUP approximate reciprocal + one Newton step (per-tile scalar cost only).
    r = pl.reciprocal(s, approx=True)
    inv_s = r * (2.0 - s * r)
    o_ref[...] = (jnp.exp(x_ref[...] - m) * inv_s).astype(o_ref.dtype)


def softmax_stable(x: jax.Array, *, row_tile: int = 1024) -> jax.Array:
    """Global numerically-stable softmax (PyTorch SoftmaxStable.forward)."""
    orig_shape = x.shape
    out_dtype = x.dtype if jnp.issubdtype(x.dtype, jnp.floating) else jnp.float32
    n = x.size

    # Flatten to (rows, 128) f32, padding with -inf (neutral for max & sum).
    flat = x.reshape(-1).astype(jnp.float32)
    pad_lanes = (-n) % _LANES
    if pad_lanes:
        flat = jnp.pad(flat, (0, pad_lanes), constant_values=-jnp.inf)
    rows = flat.shape[0] // _LANES
    x2d = flat.reshape(rows, _LANES)

    # Pick a row tile: the whole array if small, else a sublane-aligned tile,
    # padding the row count with -inf rows so the grid divides evenly.
    if rows <= row_tile:
        tr = rows                                   # full-extent block is legal
    else:
        assert row_tile % 8 == 0, "row_tile must be a multiple of 8 (sublanes)"
        tr = row_tile
        pad_rows = (-rows) % tr
        if pad_rows:
            x2d = jnp.pad(x2d, ((0, pad_rows), (0, 0)),
                          constant_values=-jnp.inf)
            rows += pad_rows
    grid_rows = rows // tr

    vmem_limit = 32 * 1024 * 1024   # explicit; safe on v5e/v6e and v7x (64 MiB)

    # ---------------- Pass 1: one HBM read  ->  global (m, s) ----------------
    m, s = pl.pallas_call(
        _pass1_reduce_kernel,
        out_shape=(jax.ShapeDtypeStruct((1, 1), jnp.float32),
                   jax.ShapeDtypeStruct((1, 1), jnp.float32)),
        grid=(grid_rows,),
        in_specs=[pl.BlockSpec((tr, _LANES), lambda i: (i, 0))],
        out_specs=(pl.BlockSpec((1, 1), lambda i: (0, 0)),
                   pl.BlockSpec((1, 1), lambda i: (0, 0))),
        compiler_params=pltpu.CompilerParams(
            dimension_semantics=("arbitrary",),     # online reduction is serial
            vmem_limit_bytes=vmem_limit),
    )(x2d)

    # ------------- Pass 2: one HBM read + one HBM write (pipelined) ----------
    out2d = pl.pallas_call(
        _pass2_normalize_kernel,
        out_shape=jax.ShapeDtypeStruct((rows, _LANES), out_dtype),
        grid=(grid_rows,),
        in_specs=[pl.BlockSpec((1, 1), lambda i: (0, 0)),
                  pl.BlockSpec((1, 1), lambda i: (0, 0)),
                  pl.BlockSpec((tr, _LANES), lambda i: (i, 0))],
        out_specs=pl.BlockSpec((tr, _LANES), lambda i: (i, 0)),
        compiler_params=pltpu.CompilerParams(
            dimension_semantics=("parallel",),      # shard tiles across v7x TCs
            vmem_limit_bytes=vmem_limit),
    )(m, s, x2d)

    return out2d.reshape(-1)[:n].reshape(orig_shape).astype(out_dtype)


def _reference(x):
    xf = x.astype(jnp.float32)
    e = jnp.exp(xf - jnp.max(xf))
    return (e / jnp.sum(e)).astype(x.dtype)


if __name__ == "__main__":
    key = jax.random.PRNGKey(0)
    k1, k2 = jax.random.split(key)

    # Case 1: small 4-D tensor, row_tile=8 to exercise the multi-tile pipeline
    # (2*4*16*16 = 2048 elements -> 16 rows x 128 lanes -> grid of 2 tiles).
    x = jax.random.normal(k1, (2, 4, 16, 16), dtype=jnp.float32)
    out = jax.block_until_ready(softmax_stable(x, row_tile=8))
    ref = _reference(x)
    assert out.shape == x.shape and out.dtype == x.dtype
    assert jnp.allclose(out, ref, atol=1e-6, rtol=1e-5)
    assert jnp.allclose(jnp.sum(out), 1.0, atol=1e-5)

    # Case 2: ragged size (105 elements) to exercise the -inf lane padding.
    y = jax.random.normal(k2, (3, 5, 7), dtype=jnp.float32)
    out_y = jax.block_until_ready(softmax_stable(y))
    ref_y = _reference(y)
    assert out_y.shape == y.shape and out_y.dtype == y.dtype
    assert jnp.allclose(out_y, ref_y, atol=1e-6, rtol=1e-5)
    assert jnp.allclose(jnp.sum(out_y), 1.0, atol=1e-5)

    print("KERNEL_OK")
</pallas_src>

<mosaic_0001>
module attributes {stable_mosaic.version = 11 : i64} {
  func.func @_pass1_reduce_kernel(%arg0: i32, %arg1: memref<8x128xf32, #tpu.memory_space<vmem>>, %arg2: memref<1x1xf32, #tpu.memory_space<vmem>>, %arg3: memref<1x1xf32, #tpu.memory_space<vmem>>) attributes {dimension_semantics = [#tpu.dimension_semantics<arbitrary>], iteration_bounds = array<i64: 2>, scalar_prefetch = 0 : i64, scratch_operands = 0 : i64, tpu.core_type = #tpu.core_type<tc>, window_params = [{transform_indices = @transform_0, window_bounds = array<i64: 8, 128>}, {pipeline_mode = #tpu.pipeline_mode<synchronous>, transform_indices = @transform_1, window_bounds = array<i64: 1, 1>}, {pipeline_mode = #tpu.pipeline_mode<synchronous>, transform_indices = @transform_2, window_bounds = array<i64: 1, 1>}]} {
    %c0_i32 = arith.constant 0 : i32
    %0 = arith.cmpi eq, %arg0, %c0_i32 : i32
    %1 = arith.extui %0 : i1 to i32
    %c0_i32_0 = arith.constant 0 : i32
    %2 = arith.cmpi ne, %1, %c0_i32_0 : i32
    scf.if %2 {
      %cst_13 = arith.constant 0xFF800000 : f32
      %24 = vector.broadcast %cst_13 : f32 to vector<1x1xf32>
      %c0_14 = arith.constant 0 : index
      %c0_15 = arith.constant 0 : index
      %25 = vector.load %arg2[%c0_14, %c0_15] : memref<1x1xf32, #tpu.memory_space<vmem>>, vector<1x1xf32>
      tpu.vector_store %arg2[%c0_14, %c0_15], %24 {strides = array<i32>} : memref<1x1xf32, #tpu.memory_space<vmem>>, vector<1x1xf32>,
      %cst_16 = arith.constant 0.000000e+00 : f32
      %26 = vector.broadcast %cst_16 : f32 to vector<1x1xf32>
      %c0_17 = arith.constant 0 : index
      %c0_18 = arith.constant 0 : index
      %27 = vector.load %arg3[%c0_17, %c0_18] : memref<1x1xf32, #tpu.memory_space<vmem>>, vector<1x1xf32>
      tpu.vector_store %arg3[%c0_17, %c0_18], %26 {strides = array<i32>} : memref<1x1xf32, #tpu.memory_space<vmem>>, vector<1x1xf32>,
    } else {
    }
    %c0 = arith.constant 0 : index
    %c0_1 = arith.constant 0 : index
    %3 = vector.load %arg1[%c0, %c0_1] : memref<8x128xf32, #tpu.memory_space<vmem>>, vector<8x128xf32>
    %cst = arith.constant dense<0xFF800000> : vector<128xf32>
    %4 = vector.multi_reduction <maximumf>, %3, %cst [0] : vector<8x128xf32> to vector<128xf32>
    %5 = vector.shape_cast %4 : vector<128xf32> to vector<1x128xf32>
    %cst_2 = arith.constant dense<0xFF800000> : vector<1xf32>
    %6 = vector.multi_reduction <maximumf>, %5, %cst_2 [1] : vector<1x128xf32> to vector<1xf32>
    %7 = vector.shape_cast %6 : vector<1xf32> to vector<1x1xf32>
    %c0_3 = arith.constant 0 : index
    %c0_4 = arith.constant 0 : index
    %8 = vector.load %arg2[%c0_3, %c0_4] : memref<1x1xf32, #tpu.memory_space<vmem>>, vector<1x1xf32>
    %9 = arith.maximumf %8, %7 : vector<1x1xf32>
    %10 = vector.broadcast %9 : vector<1x1xf32> to vector<8x128xf32>
    %11 = arith.subf %3, %10 : vector<8x128xf32>
    %12 = math.exp %11 : vector<8x128xf32>
    %cst_5 = arith.constant dense<0.000000e+00> : vector<128xf32>
    %13 = vector.multi_reduction <add>, %12, %cst_5 [0] : vector<8x128xf32> to vector<128xf32>
    %14 = vector.shape_cast %13 : vector<128xf32> to vector<1x128xf32>
    %cst_6 = arith.constant dense<0.000000e+00> : vector<1xf32>
    %15 = vector.multi_reduction <add>, %14, %cst_6 [1] : vector<1x128xf32> to vector<1xf32>
    %16 = vector.shape_cast %15 : vector<1xf32> to vector<1x1xf32>
    %c0_7 = arith.constant 0 : index
    %c0_8 = arith.constant 0 : index
    %17 = vector.load %arg3[%c0_7, %c0_8] : memref<1x1xf32, #tpu.memory_space<vmem>>, vector<1x1xf32>
    %18 = arith.subf %8, %9 : vector<1x1xf32>
    %19 = math.exp %18 : vector<1x1xf32>
    %20 = arith.mulf %17, %19 : vector<1x1xf32>
    %21 = arith.addf %20, %16 : vector<1x1xf32>
    %c0_9 = arith.constant 0 : index
    %c0_10 = arith.constant 0 : index
    %22 = vector.load %arg3[%c0_9, %c0_10] : memref<1x1xf32, #tpu.memory_space<vmem>>, vector<1x1xf32>
    tpu.vector_store %arg3[%c0_9, %c0_10], %21 {strides = array<i32>} : memref<1x1xf32, #tpu.memory_space<vmem>>, vector<1x1xf32>,
    %c0_11 = arith.constant 0 : index
    %c0_12 = arith.constant 0 : index
    %23 = vector.load %arg2[%c0_11, %c0_12] : memref<1x1xf32, #tpu.memory_space<vmem>>, vector<1x1xf32>
    tpu.vector_store %arg2[%c0_11, %c0_12], %9 {strides = array<i32>} : memref<1x1xf32, #tpu.memory_space<vmem>>, vector<1x1xf32>,
    return
  }
  func.func @transform_0(%arg0: i32) -> (i32, i32) {
    %c0_i32 = arith.constant 0 : i32
    %c0_i32_0 = arith.constant 0 : i32
    return %arg0, %c0_i32 : i32, i32
  }
  func.func @transform_1(%arg0: i32) -> (i32, i32) {
    %c0_i32 = arith.constant 0 : i32
    %c0_i32_0 = arith.constant 0 : i32
    %c0_i32_1 = arith.constant 0 : i32
    return %c0_i32, %c0_i32_0 : i32, i32
  }
  func.func @transform_2(%arg0: i32) -> (i32, i32) {
    %c0_i32 = arith.constant 0 : i32
    %c0_i32_0 = arith.constant 0 : i32
    %c0_i32_1 = arith.constant 0 : i32
    return %c0_i32, %c0_i32_0 : i32, i32
  }
}

</mosaic_0001>

<llo_original>
// kernel: tpu_custom_call.1
$region0: #{tpu_custom_call.1}
  #allocation0 [shape = 'u32[]', space=smem, size = 0x4, offset = 0x4, fixed_abs, tag = 'smem constant byte address 0x4 - core index']
  #allocation1 [shape = 'u32[144,128]{1,0:T(1,128)}', space=vmem, size = 0x12000, scoped, tag = 'internal scratch']
  %s0 = inlined_call_operand.hbm [shape: f32[16,128], index: 0, kind: input, shape index: {}]
  %s1 = inlined_call_operand.hbm [shape: f32[1,1], index: 1, kind: output, shape index: {0}]
  %s2 = inlined_call_operand.hbm [shape: f32[1,1], index: 2, kind: output, shape index: {1}]
  %3 = xla_tuple %s1, %s2
  %s4 = sld [smem:[#allocation0]]
  $region53: #{tpu_custom_call.1} parent=0
    _
  %s6 = ssub.s32 1, %s4
  %s7 = scalar_select 0, %s6, %s4
  $region1: #{tpu_custom_call.1} parent=0
    #allocation2 [shape = 'u8[8192]{0}', space=vmem, size = 0x2000, scoped, tag = 'input window, operand 0']
    #allocation3 [shape = 's32[2]{0}', space=sflag, size = 0x8, scoped, tag = 'scoped memory for tpu_custom_call.1']
    #allocation4 [shape = 's32[2]{0}', space=sflag, size = 0x8, scoped, tag = 'scoped memory for tpu_custom_call.1']
    #allocation5 [shape = 'u8[512]{0}', space=vmem, size = 0x400, scoped, tag = 'output window, operand 0, single buffered']
    #allocation6 [shape = 'u8[512]{0}', space=vmem, size = 0x400, scoped, tag = 'output window, operand 1, single buffered']
    #allocation7 [shape = 's32[1]{0}', space=sflag, size = 0x4, scoped, tag = 'scoped memory for tpu_custom_call.1']
    %8 = vsyncpa [#allocation3], 0
    %s9 = scalar_lea.sflag [#allocation3], 1
    %10 = vsyncpa %s9, 0
    %11 = vsyncpa [#allocation4], 0
    %12 = vsyncpa [#allocation7], 0
    loop: start=0, step=1, limit=4
    $region2: #{tpu_custom_call.1} parent=1 // loop_pre_header
      _
    $region3: #{tpu_custom_call.1} parent=1 // loop_header
      %s14 = sphi 0, %s18
      %p15 = scmp.ge.s32.totalorder %s14, 4
      %s24 = sphi 0, %s26
      %s27 = sphi 0, %s24
      %s28 = sphi 0, %s27
      %s44 = sphi 0, %s28
      %s48 = sphi 0, %s48
      %s50 = sphi 0, %s48
      %s51 = sphi 0, %s50
      %s65 = sphi 0, %s51
      %s69 = sphi 0, %s69
      %s71 = sphi 0, %s69
      %s72 = sphi 0, %s71
      %s86 = sphi 0, %s72
    $region4: #{tpu_custom_call.1} parent=1 // loop_header_branch
      %17 = sbr.rel (%p15) target = $region8
    $region5: #{tpu_custom_call.1} parent=1 // loop_body
      %s19 = ssub.s32 %s14, 1
      %s20 = ssub.s32 %s14, 2
      %s21 = sadd.s32 %s14, 1
      %s22 = ssub.s32 %s14, %s21
      %p23 = scmp.eq.s32.totalorder %s22, 0
      %s25 = sadd.s32 %s24, 1
      %s26 = scalar_select %p23, %s24, %s25
      %p29 = pneg %p23
      %p30 = scmp.eq.s32.totalorder %s14, 1
      %p31 = por %p29, %p30
      %p32 = scmp.ne.s32.totalorder %s24, %s27
      %p33 = scmp.eq.s32.totalorder %s14, 0
      %p34 = por %p32, %p33
      %p35 = scmp.ne.s32.totalorder %s24, %s27
      %p36 = scmp.eq.s32.totalorder %s19, 1
      %p37 = por %p35, %p36
      %p38 = scmp.ne.s32.totalorder %s27, %s28
      %p39 = scmp.eq.s32.totalorder %s19, 0
      %p40 = por %p38, %p39
      %p41 = scmp.ne.s32.totalorder %s27, %s28
      %p42 = scmp.eq.s32.totalorder %s20, 1
      %p43 = por %p41, %p42
      %p45 = scmp.ne.s32.totalorder %s28, %s44
      %p46 = scmp.eq.s32.totalorder %s20, 0
      %p47 = por %p45, %p46
      %s49 = sadd.s32 %s48, 1
      %p52 = scmp.eq.s32.totalorder %s14, 1
      %p53 = scmp.ne.s32.totalorder %s48, %s50
      %p54 = scmp.eq.s32.totalorder %s14, 0
      %p55 = por %p53, %p54
      %p56 = scmp.ne.s32.totalorder %s48, %s50
      %p57 = scmp.eq.s32.totalorder %s19, 1
      %p58 = por %p56, %p57
      %p59 = scmp.ne.s32.totalorder %s50, %s51
      %p60 = scmp.eq.s32.totalorder %s19, 0
      %p61 = por %p59, %p60
      %p62 = scmp.ne.s32.totalorder %s50, %s51
      %p63 = scmp.eq.s32.totalorder %s20, 1
      %p64 = por %p62, %p63
      %p66 = scmp.ne.s32.totalorder %s51, %s65
      %p67 = scmp.eq.s32.totalorder %s20, 0
      %p68 = por %p66, %p67
      %s70 = sadd.s32 %s69, 1
      %p73 = scmp.eq.s32.totalorder %s14, 1
      %p74 = scmp.ne.s32.totalorder %s69, %s71
      %p75 = scmp.eq.s32.totalorder %s14, 0
      %p76 = por %p74, %p75
      %p77 = scmp.ne.s32.totalorder %s69, %s71
      %p78 = scmp.eq.s32.totalorder %s19, 1
      %p79 = por %p77, %p78
      %p80 = scmp.ne.s32.totalorder %s71, %s72
      %p81 = scmp.eq.s32.totalorder %s19, 0
      %p82 = por %p80, %p81
      %p83 = scmp.ne.s32.totalorder %s71, %s72
      %p84 = scmp.eq.s32.totalorder %s20, 1
      %p85 = por %p83, %p84
      %p87 = scmp.ne.s32.totalorder %s72, %s86
      %p88 = scmp.eq.s32.totalorder %s20, 0
      %p89 = por %p87, %p88
      %p90 = scmp.le.s32.totalorder 1, %s14
      %p91 = scmp.lt.s32.totalorder %s14, 3
      %p92 = pnand %p90, %p91
      %p93 = pneg %p92
      // Predicated region
      $region9: #{tpu_custom_call.1} parent=5 // pred_check
        _
      $region10: #{tpu_custom_call.1} parent=5 // pred_check_branch
        %95 = sbr.rel (%p92) target = $region12
      $region11: #{tpu_custom_call.1} parent=5 // pred_region
        %s96 = ssub.s32 %s14, 1
      $region12: #{tpu_custom_call.1} parent=5 // pred_fallthru
        _
      %p97 = scmp.lt.s32.totalorder %s14, 2
      // Predicated region
      $region13: #{tpu_custom_call.1} parent=5 // pred_check
        %p98 = pneg %p97
      $region14: #{tpu_custom_call.1} parent=5 // pred_check_branch
        %100 = sbr.rel (%p98) target = $region16
      $region15: #{tpu_custom_call.1} parent=5 // pred_region
        // Predicated region
        $region17: #{tpu_custom_call.1} parent=15 // pred_check
          %p101 = pneg %p34
        $region18: #{tpu_custom_call.1} parent=15 // pred_check_branch
          %103 = sbr.rel (%p101) target = $region20
        $region19: #{tpu_custom_call.1} parent=15 // pred_region
          %s104 = sand.u32 %s24, 1
          %s105 = scalar_lea.sflag [#allocation3], %s104
          %s106 = sand.u32 %s24, 1
          %s107 = smul.addr %s106, 8
          %s108 = scalar_lea.vmem [#allocation2], %s107
          %s110 = ssub.s32 128, 128
          %111 = vsyncadd %s105, %s110
          %s112 = smul.addr %s14, 128
          %s113 = scalar_lea.hbm %s0, %s112
          %s115 = sshll.u32 %s108, 4
          %s116 = int_to_ptr.vmem [resolvable:$true] %s115
          %118 = dma.hbm_to_vmem [thread:$0]  %s113, 128, %s116, %s105
        $region20: #{tpu_custom_call.1} parent=15 // pred_fallthru
          _
      $region16: #{tpu_custom_call.1} parent=5 // pred_fallthru
        _
      %p119 = scmp.le.s32.totalorder 1, %s14
      %p120 = scmp.lt.s32.totalorder %s14, 3
      %p121 = pnand %p119, %p120
      %p122 = pneg %p121
      // Predicated region
      $region21: #{tpu_custom_call.1} parent=5 // pred_check
        _
      $region22: #{tpu_custom_call.1} parent=5 // pred_check_branch
        %124 = sbr.rel (%p121) target = $region24
      $region23: #{tpu_custom_call.1} parent=5 // pred_region
        %s125 = ssub.s32 %s14, 1
        %s126 = sand.u32 %s27, 1
        %s127 = scalar_lea.sflag [#allocation3], %s126
        %s128 = sand.u32 %s27, 1
        %s129 = smul.addr %s128, 8
        %s130 = scalar_lea.vmem [#allocation2], %s129
        // Predicated region
        $region25: #{tpu_custom_call.1} parent=23 // pred_check
          %p131 = pneg %p40
        $region26: #{tpu_custom_call.1} parent=23 // pred_check_branch
          %133 = sbr.rel (%p131) target = $region28
        $region27: #{tpu_custom_call.1} parent=23 // pred_region
          %134 = dma.done %s127, 128
        $region28: #{tpu_custom_call.1} parent=23 // pred_fallthru
          _
        %s135 = sand.u32 %s27, 1
        %s136 = scalar_lea.sflag [#allocation3], %s135
        %s137 = sand.u32 %s27, 1
        %s138 = smul.addr %s137, 8
        %s139 = scalar_lea.vmem [#allocation2], %s138
        %p140 = pneg %p40
        %p141 = pneg %p37
        %p142 = pneg %p61
        %p143 = pneg %p58
        %p144 = pneg %p82
        %p145 = pneg %p79
        %p146 = scmp.eq.s32.totalorder %s19, 0
        // Predicated region
        $region29: #{tpu_custom_call.1} parent=23 // pred_check
          %p147 = pneg %p146
        $region30: #{tpu_custom_call.1} parent=23 // pred_check_branch
          %149 = sbr.rel (%p147) target = $region32
        $region31: #{tpu_custom_call.1} parent=23 // pred_region
          %vm150 = vcmask 0
          %151 = vst.msk [vmem:[#allocation5] sm:$0x1] %vm150, -inf
          %152 = vst.msk [vmem:[#allocation6] sm:$0x1] %vm150, 0.0
        $region32: #{tpu_custom_call.1} parent=23 // pred_fallthru
          _
        %v153 = vld [vmem:[%s130] sm:$0xff]
        %v154 = vrot.slane %v153, 4
        %v155 = vmax.f32 %v153, %v154
        %v156 = vrot.slane %v155, 2
        %v157 = vmax.f32 %v155, %v156
        %v158 = vrot.slane %v157, 1
        %v159 = vmax.f32 %v157, %v158
        %160 = vmax.xlane.f32.xlu0 %v159
        %v161 = vpop.xlane.xlu0 %160
        %v162 = vld [vmem:[#allocation5] sm:$0x1]
        %v163 = vmax.f32 %v162, %v161
        %v165 = vlaneseq
        %v166 = vshrl.u32 %v165, 7
        %v167 = vsub.s32 0, %v166
        %v168 = vrot.slane %v163, %v167
        %169 = vset.pattern.permute.xlu0 0
        %170 = vperm.xlu0 %169, %v168
        %v171 = vpop.permute.xlu0 %170
        %v173 = vsub.f32 %v153, %v171
        %v174 = vmul.f32 %v173, 1.442695
        %v175 = vpow.pop %v174
        %v176 = vrot.slane %v175, 4
        %v177 = vadd.f32 %v175, %v176
        %v178 = vrot.slane %v177, 2
        %v179 = vadd.f32 %v177, %v178
        %v180 = vrot.slane %v179, 1
        %v181 = vadd.f32 %v179, %v180
        %182 = vadd.xlane.f32.xlu0 %v181
        %v183 = vpop.xlane.xlu0 %182
        %v184 = vld [vmem:[#allocation6] sm:$0x1]
        %v185 = vsub.f32 %v162, %v163
        %v186 = vmul.f32 %v185, 1.442695
        %v187 = vpow.pop %v186
        %v188 = vmul.f32 %v184, %v187
        %v189 = vadd.f32 %v188, %v183
        %vm190 = vcmask 0
        %191 = vst.msk [vmem:[#allocation6] sm:$0x1] %vm190, %v189
        %192 = vst.msk [vmem:[#allocation5] sm:$0x1] %vm190, %v163
        // Predicated region
        $region33: #{tpu_custom_call.1} parent=23 // pred_check
          %p193 = pneg %p58
        $region34: #{tpu_custom_call.1} parent=23 // pred_check_branch
          %195 = sbr.rel (%p193) target = $region36
        $region35: #{tpu_custom_call.1} parent=23 // pred_region
          %s197 = ssub.s32 16, 16
          %198 = vsyncadd [#allocation4], %s197
          %s200 = sshll.u32 [#allocation5], 4
          %s201 = int_to_ptr.vmem [resolvable:$true] %s200
          %203 = dma.vmem_to_hbm [thread:$0]  %s201, 16, %s1, [#allocation4]
        $region36: #{tpu_custom_call.1} parent=23 // pred_fallthru
          _
        // Predicated region
        $region37: #{tpu_custom_call.1} parent=23 // pred_check
          %p204 = pneg %p79
        $region38: #{tpu_custom_call.1} parent=23 // pred_check_branch
          %206 = sbr.rel (%p204) target = $region40
        $region39: #{tpu_custom_call.1} parent=23 // pred_region
          %s208 = ssub.s32 16, 16
          %209 = vsyncadd [#allocation7], %s208
          %s211 = sshll.u32 [#allocation6], 4
          %s212 = int_to_ptr.vmem [resolvable:$true] %s211
          %214 = dma.vmem_to_hbm [thread:$0]  %s212, 16, %s2, [#allocation7]
        $region40: #{tpu_custom_call.1} parent=23 // pred_fallthru
          _
        // Predicated region
        $region41: #{tpu_custom_call.1} parent=23 // pred_check
          %p215 = pneg %p58
        $region42: #{tpu_custom_call.1} parent=23 // pred_check_branch
          %217 = sbr.rel (%p215) target = $region44
        $region43: #{tpu_custom_call.1} parent=23 // pred_region
          %218 = dma.done [#allocation4], 16
        $region44: #{tpu_custom_call.1} parent=23 // pred_fallthru
          _
        // Predicated region
        $region45: #{tpu_custom_call.1} parent=23 // pred_check
          %p219 = pneg %p79
        $region46: #{tpu_custom_call.1} parent=23 // pred_check_branch
          %221 = sbr.rel (%p219) target = $region48
        $region47: #{tpu_custom_call.1} parent=23 // pred_region
          %222 = dma.done [#allocation7], 16
        $region48: #{tpu_custom_call.1} parent=23 // pred_fallthru
          _
      $region24: #{tpu_custom_call.1} parent=5 // pred_fallthru
        _
      %p223 = scmp.le.s32.totalorder 2, %s14
      // Predicated region
      $region49: #{tpu_custom_call.1} parent=5 // pred_check
        %p224 = pneg %p223
      $region50: #{tpu_custom_call.1} parent=5 // pred_check_branch
        %226 = sbr.rel (%p224) target = $region52
      $region51: #{tpu_custom_call.1} parent=5 // pred_region
        %s227 = ssub.s32 %s14, 2
      $region52: #{tpu_custom_call.1} parent=5 // pred_fallthru
        _
    $region6: #{tpu_custom_call.1} parent=1 // loop_footer
      %s18 = sadd.s32 1, %s14
    $region7: #{tpu_custom_call.1} parent=1 // loop_footer_branch
      %13 = sbr.rel target = $region3
    $region8: #{tpu_custom_call.1} parent=1 // loop_exit
      _
    %228 = vsyncpa [#allocation3], 1
    %s229 = scalar_lea.sflag [#allocation3], 1
    %230 = vsyncpa %s229, 1
    %231 = vsyncpa [#allocation4], 1
    %s232 = scalar_lea.sflag [#allocation4], 1
    %233 = vsyncpa %s232, 1
    %234 = vsyncpa [#allocation7], 1

</llo_original>
